<compile_context>
chip_gen: v7x
topology: tpu7x:2x2x1
jax: 0.10.0
libtpu: 0.0.40
codegen_flags: <defaults>
</compile_context>

<pallas_src>
import functools

import jax
import jax.numpy as jnp
from jax.experimental import pallas as pl
from jax.experimental.pallas import tpu as pltpu


def _round_up(x, m):
    return ((x + m - 1) // m) * m


def _lm_head_kernel(x_ref, w_ref, b_ref, o_ref):
    # x_ref: (tm, D) bf16, w_ref: (D, tn) bf16, b_ref: (1, tn) f32, o_ref: (tm, tn)
    acc = jnp.dot(x_ref[...], w_ref[...], preferred_element_type=jnp.float32)
    o_ref[...] = (acc + b_ref[...]).astype(o_ref.dtype)


@functools.partial(
    jax.jit, static_argnames=("tm_max", "tn_max", "compute_dtype", "out_dtype"))
def linear_lm_head(embeddings, weight_t, bias, *, tm_max=256, tn_max=1024,
                   compute_dtype=jnp.bfloat16, out_dtype=None):
    """embeddings: (B, S, D); weight_t: (D, V), ideally stored in bf16; bias: (V,).

    Returns (B, S, V) logits in `out_dtype` (default embeddings.dtype; pass
    jnp.bfloat16 to halve logits write traffic when downstream allows it).
    """
    B, S, D = embeddings.shape
    V = weight_t.shape[1]
    M = B * S
    if out_dtype is None:
        out_dtype = embeddings.dtype
    out_bytes = jnp.dtype(out_dtype).itemsize
    cd_bytes = jnp.dtype(compute_dtype).itemsize

    # Tile sizes: tm multiple of 16 (bf16 sublane packing), tn multiple of 128
    # (lane granule), both capped by the problem size.  Ragged tails are masked
    # at the output boundary blocks, so no padding anywhere.
    tm = min(tm_max, _round_up(M, 16))
    tn = min(tn_max, _round_up(V, 128))
    n_m = pl.cdiv(M, tm)
    n_v = pl.cdiv(V, tn)

    # Activations: cast once to bf16 (they are re-streamed n_v times, so the
    # one-time cast pays for itself whenever n_v >= 2).  Weight stays as stored
    # (cast only as a fallback if the caller didn't store bf16); bias stays f32.
    x2d = embeddings.reshape(M, D)
    if x2d.dtype != compute_dtype:
        x2d = x2d.astype(compute_dtype)
    if weight_t.dtype != compute_dtype:  # prefer storing the weight in bf16 persistently
        weight_t = weight_t.astype(compute_dtype)
    b2d = bias.astype(jnp.float32).reshape(1, V)

    # VMEM budgeting from the actual tile footprint.  The weight block only
    # changes once per inner-M pass, so single-buffering it (one exposed DMA per
    # outer step, amortized over n_m inner steps) is used when double-buffering
    # everything would crowd v7x's 64 MiB VMEM.
    footprint_db = (2 * D * tn * cd_bytes      # weight block, double-buffered
                    + 2 * tm * D * cd_bytes    # activation block
                    + 2 * tm * tn * out_bytes  # output block
                    + 2 * tn * 4)              # bias block
    single_buffer_weight = footprint_db > (44 << 20)
    w_bufs = 1 if single_buffer_weight else 2
    footprint = footprint_db - (2 - w_bufs) * D * tn * cd_bytes
    vmem_limit = max(32 << 20, min(int(footprint * 1.15) + (4 << 20), 100 << 20))
    # TODO(synk): once (w_bufs*D*tn + 2*tm*D)*2B approaches the VMEM budget
    # (e.g. D >= ~8K at tn >= 1024 on v7x), add a K/D grid axis ("arbitrary")
    # with an f32 VMEM accumulator instead of loading the full (D, tn) weight.

    w_spec_kwargs = {}
    if single_buffer_weight:
        w_spec_kwargs["pipeline_mode"] = pl.Buffered(1)

    cost = pl.CostEstimate(
        flops=2 * M * D * V,
        transcendentals=0,
        bytes_accessed=int(
            M * D * cd_bytes * n_v       # activations re-streamed per vocab tile
            + D * V * cd_bytes           # weight streamed exactly once
            + V * 4                      # bias
            + M * V * out_bytes),        # logits write
    )

    out2d = pl.pallas_call(
        _lm_head_kernel,
        out_shape=jax.ShapeDtypeStruct((M, V), out_dtype),
        grid_spec=pltpu.PrefetchScalarGridSpec(
            num_scalar_prefetch=0,
            # vocab OUTER: the weight block is keyed only on it, so it stays
            # resident in VMEM across the inner M loop.
            grid=(n_v, n_m),
            in_specs=[
                pl.BlockSpec((tm, D), lambda j, i: (i, 0)),                   # activations
                pl.BlockSpec((D, tn), lambda j, i: (0, j), **w_spec_kwargs),  # weight (resident)
                pl.BlockSpec((1, tn), lambda j, i: (0, j)),                   # bias
            ],
            out_specs=pl.BlockSpec((tm, tn), lambda j, i: (i, j)),
        ),
        compiler_params=pltpu.CompilerParams(
            # Pin any megacore split to the vocab axis (axis 0): splitting the
            # M axis across cores would double the weight HBM stream.
            dimension_semantics=("parallel", "arbitrary"),
            vmem_limit_bytes=vmem_limit,
        ),
        cost_estimate=cost,
    )(x2d, weight_t, b2d)

    return out2d.reshape(B, S, V)


def init_params(key, vocab_size, embedding_dim, compute_dtype=jnp.bfloat16):
    # nn.init.xavier_normal_ on (vocab_size, embedding_dim) weight:
    # std = sqrt(2 / (fan_in + fan_out)) = sqrt(2 / (embedding_dim + vocab_size))
    std = (2.0 / (embedding_dim + vocab_size)) ** 0.5
    w = jax.random.normal(key, (vocab_size, embedding_dim), dtype=jnp.float32) * std
    b = jnp.zeros((vocab_size,), dtype=jnp.float32)  # bias.data.fill_(0.0)
    # Store transposed (D, V) and already in the kernel compute dtype so no
    # per-call full-weight cast / pad pass is needed.
    return w.T.astype(compute_dtype), b


if __name__ == "__main__":
    key = jax.random.PRNGKey(0)
    k_w, k_x = jax.random.split(key)

    # Small, deliberately non-tile-divisible shapes to exercise boundary masking.
    batch, seq, embedding_dim, vocab_size = 2, 7, 32, 200
    weight_t, bias = init_params(k_w, vocab_size, embedding_dim)
    embeddings = jax.random.normal(k_x, (batch, seq, embedding_dim), dtype=jnp.float32)

    logits = linear_lm_head(embeddings, weight_t, bias)
    jax.block_until_ready(logits)

    # Reference (plain JAX on the same stored bf16 weight; kernel uses bf16
    # operands with f32 accumulation).
    ref = embeddings @ weight_t.astype(jnp.float32) + bias
    assert logits.shape == (batch, seq, vocab_size)
    assert logits.dtype == embeddings.dtype
    assert jnp.allclose(logits, ref, atol=3e-2, rtol=3e-2), float(
        jnp.max(jnp.abs(logits - ref)))

    print("KERNEL_OK")
</pallas_src>

<mosaic_0001>
module attributes {stable_mosaic.version = 11 : i64} {
  func.func @_lm_head_kernel(%arg0: i32, %arg1: i32, %arg2: memref<16x32xbf16, #tpu.memory_space<vmem>>, %arg3: memref<32x256xbf16, #tpu.memory_space<vmem>>, %arg4: memref<1x256xf32, #tpu.memory_space<vmem>>, %arg5: memref<16x256xf32, #tpu.memory_space<vmem>>) attributes {dimension_semantics = [#tpu.dimension_semantics<parallel>, #tpu.dimension_semantics<arbitrary>], iteration_bounds = array<i64: 1, 1>, scalar_prefetch = 0 : i64, scratch_operands = 0 : i64, tpu.core_type = #tpu.core_type<tc>, window_params = [{transform_indices = @transform_0, window_bounds = array<i64: 16, 32>}, {transform_indices = @transform_1, window_bounds = array<i64: 32, 256>}, {transform_indices = @transform_2, window_bounds = array<i64: 1, 256>}, {transform_indices = @transform_3, window_bounds = array<i64: 16, 256>}]} {
    %c0 = arith.constant 0 : index
    %c0_0 = arith.constant 0 : index
    %0 = vector.load %arg2[%c0, %c0_0] : memref<16x32xbf16, #tpu.memory_space<vmem>>, vector<16x32xbf16>
    %c0_1 = arith.constant 0 : index
    %c0_2 = arith.constant 0 : index
    %1 = vector.load %arg3[%c0_1, %c0_2] : memref<32x256xbf16, #tpu.memory_space<vmem>>, vector<32x256xbf16>
    %cst = arith.constant dense<0.000000e+00> : vector<16x256xf32>
    %2 = tpu.matmul %0, %1, %cst {dimension_numbers = #tpu.dot_dimension_numbers<[1], [0], [0], [1], [0, 0, 1, 1], [], []>} : vector<16x32xbf16>, vector<32x256xbf16>, vector<16x256xf32> -> vector<16x256xf32>
    %c0_3 = arith.constant 0 : index
    %c0_4 = arith.constant 0 : index
    %3 = vector.load %arg4[%c0_3, %c0_4] : memref<1x256xf32, #tpu.memory_space<vmem>>, vector<1x256xf32>
    %4 = vector.broadcast %3 : vector<1x256xf32> to vector<16x256xf32>
    %5 = arith.addf %2, %4 : vector<16x256xf32>
    %c0_5 = arith.constant 0 : index
    %c0_6 = arith.constant 0 : index
    %6 = vector.load %arg5[%c0_5, %c0_6] : memref<16x256xf32, #tpu.memory_space<vmem>>, vector<16x256xf32>
    tpu.vector_store %arg5[%c0_5, %c0_6], %5 {strides = array<i32>} : memref<16x256xf32, #tpu.memory_space<vmem>>, vector<16x256xf32>,
    return
  }
  func.func @transform_0(%arg0: i32, %arg1: i32) -> (i32, i32) {
    %c0_i32 = arith.constant 0 : i32
    %c0_i32_0 = arith.constant 0 : i32
    return %arg1, %c0_i32 : i32, i32
  }
  func.func @transform_1(%arg0: i32, %arg1: i32) -> (i32, i32) {
    %c0_i32 = arith.constant 0 : i32
    %c0_i32_0 = arith.constant 0 : i32
    return %c0_i32, %arg0 : i32, i32
  }
  func.func @transform_2(%arg0: i32, %arg1: i32) -> (i32, i32) {
    %c0_i32 = arith.constant 0 : i32
    %c0_i32_0 = arith.constant 0 : i32
    return %c0_i32, %arg0 : i32, i32
  }
  func.func @transform_3(%arg0: i32, %arg1: i32) -> (i32, i32) {
    %c0_i32 = arith.constant 0 : i32
    return %arg1, %arg0 : i32, i32
  }
}

</mosaic_0001>

<llo_original>
// kernel: linear_lm_head.1
$region0: #{linear_lm_head.1}
  #allocation0 [shape = 'u32[]', space=smem, size = 0x4, offset = 0x4, fixed_abs, tag = 'smem constant byte address 0x4 - core index']
  #allocation1 [shape = 'u32[144,128]{1,0:T(1,128)}', space=vmem, size = 0x12000, scoped, tag = 'internal scratch']
  %s0 = inlined_call_operand.vmem [shape: bf16[14,32], index: 0, kind: input, shape index: {}]
  %s1 = inlined_call_operand.vmem [shape: bf16[32,200], index: 1, kind: input, shape index: {}]
  %s2 = inlined_call_operand.vmem [shape: f32[1,200], index: 2, kind: input, shape index: {}]
  %s3 = inlined_call_operand.vmem [shape: f32[14,200], index: 3, kind: output, shape index: {}]
  %s4 = sld [smem:[#allocation0]]
  $region22: #{linear_lm_head.1} parent=0
    _
  %s6 = ssub.s32 1, %s4
  %s7 = scalar_select 0, %s6, %s4
  // Predicated region
  $region2: #{linear_lm_head.1} parent=0 // pred_check
    _
  $region3: #{linear_lm_head.1} parent=0 // pred_check_branch
    %9 = sbr.rel (0) target = $region5
  $region4: #{linear_lm_head.1} parent=0 // pred_region
    _
  $region5: #{linear_lm_head.1} parent=0 // pred_fallthru
    _
  // Predicated region
  $region6: #{linear_lm_head.1} parent=0 // pred_check
    _
  $region7: #{linear_lm_head.1} parent=0 // pred_check_branch
    %11 = sbr.rel (0) target = $region9
  $region8: #{linear_lm_head.1} parent=0 // pred_region
    _
  $region9: #{linear_lm_head.1} parent=0 // pred_fallthru
    _
  // Predicated region
  $region10: #{linear_lm_head.1} parent=0 // pred_check
    _
  $region11: #{linear_lm_head.1} parent=0 // pred_check_branch
    %13 = sbr.rel (0) target = $region13
  $region12: #{linear_lm_head.1} parent=0 // pred_region
    _
  $region13: #{linear_lm_head.1} parent=0 // pred_fallthru
    _
  %v15 = vld [vmem:[%s0] sm:$0xf]
  %v16 = vld [vmem:[%s0 + $0x4] sm:$0xf]
  %v17 = vld [vmem:[%s1] sm:$0xff]
  %v18 = vld [vmem:[%s1 + $0x8] sm:$0xff]
  %v19 = vld [vmem:[%s1 + $0x10] sm:$0xff]
  %v20 = vld [vmem:[%s1 + $0x18] sm:$0xff]
  %v21 = vld [vmem:[%s2] sm:$0x3]
  %v23 = vlaneseq
  %v24 = vshrl.u32 %v23, 7
  %v25 = vsub.s32 0, %v24
  %v26 = vrot.slane %v21, %v25
  %v27 = vlaneseq
  %v28 = vshrl.u32 %v27, 7
  %v29 = vsub.s32 1, %v28
  %v30 = vrot.slane %v21, %v29
  %v35 = vunpack.c.l.b16 %v15
  %v36 = vunpack.c.l.b16 %v16
  %v37 = vpack.c.b16 %v36, %v35
  %v42 = vunpack.c.l.b16 %v17
  %v43 = vunpack.c.h.b16 %v17
  %v44 = vunpack.c.l.b16 %v18
  %v45 = vunpack.c.h.b16 %v18
  %v46 = vunpack.c.l.b16 %v19
  %v47 = vunpack.c.h.b16 %v19
  %v48 = vunpack.c.l.b16 %v20
  %v49 = vunpack.c.h.b16 %v20
  %v50 = vpack.c.b16 %v44, %v42
  %v51 = vpack.c.b16 %v45, %v43
  %v52 = vpack.c.b16 %v48, %v46
  %v53 = vpack.c.b16 %v49, %v47
  %vm58 = vcmask 261120
  %v60 = vsel %vm58, %v37, 0
  %62 = vmatprep.subr.bf16.mxu0 %v51
  %63 = vmatpush1.bf16.msra.mxu0 %v50
  %64 = vmatprep.subr.bf16.mxu0 %v53
  %65 = vmatpush1.bf16.msra.mxu0 %v52
  %66 = vmatprep.subr.bf16.mxu0 0
  %67 = vmatpush1.bf16.msra.mxu0 0
  %68 = vmatprep.subr.bf16.mxu0 0
  %69 = vmatpush1.bf16.msra.mxu0 0
  %70 = vmatprep.subr.bf16.mxu0 0
  %71 = vmatpush1.bf16.msra.mxu0 0
  %72 = vmatprep.subr.bf16.mxu0 0
  %73 = vmatpush1.bf16.msra.mxu0 0
  %74 = vmatprep.subr.bf16.mxu0 0
  %75 = vmatpush1.bf16.msra.mxu0 0
  %76 = vmatprep.subr.bf16.mxu0 0
  %77 = vmatpush1.bf16.msra.mxu0 0
  %78 = vmatprep.subr.bf16.mxu0 0
  %79 = vmatpush1.bf16.msra.mxu0 0
  %80 = vmatprep.subr.bf16.mxu0 0
  %81 = vmatpush1.bf16.msra.mxu0 0
  %82 = vmatprep.subr.bf16.mxu0 0
  %83 = vmatpush1.bf16.msra.mxu0 0
  %84 = vmatprep.subr.bf16.mxu0 0
  %85 = vmatpush1.bf16.msra.mxu0 0
  %86 = vmatprep.subr.bf16.mxu0 0
  %87 = vmatpush1.bf16.msra.mxu0 0
  %88 = vmatprep.subr.bf16.mxu0 0
  %89 = vmatpush1.bf16.msra.mxu0 0
  %90 = vmatprep.subr.bf16.mxu0 0
  %91 = vmatpush1.bf16.msra.mxu0 0
  %92 = vmatprep.subr.bf16.mxu0 0
  %93 = vmatpush1.bf16.msra.mxu0 0
  %94 = vmatprep.mubr.bf16.mxu0 0
  %95 = vmatmul.mubr.bf16.gmra.mrb[0].mxu0 %v60
  %v96 = vpop.f32.mrb[0].mxu0
  %v97 = vadd.f32 %v26, %v96
  %v98 = vpop.f32.mrb[0].mxu0
  %v99 = vadd.f32 %v30, %v98
  %v100 = vpop.f32.mrb[0].mxu0
  %v101 = vadd.f32 %v26, %v100
  %v102 = vpop.f32.mrb[0].mxu0
  %v103 = vadd.f32 %v30, %v102
  %104 = vdwg.mxu0
  %105 = vst [vmem:[%s3] sm:$0xff] %v97
  %106 = vst [vmem:[%s3 + $0x8] sm:$0xff] %v99
  %107 = vst [vmem:[%s3 + $0x10] sm:$0xff] %v101
  %108 = vst [vmem:[%s3 + $0x18] sm:$0xff] %v103
  // Predicated region
  $region14: #{linear_lm_head.1} parent=0 // pred_check
    _
  $region15: #{linear_lm_head.1} parent=0 // pred_check_branch
    %110 = sbr.rel (0) target = $region17
  $region16: #{linear_lm_head.1} parent=0 // pred_region
    _
  $region17: #{linear_lm_head.1} parent=0 // pred_fallthru
    _
  // Predicated region
  $region18: #{linear_lm_head.1} parent=0 // pred_check
    _
  $region19: #{linear_lm_head.1} parent=0 // pred_check_branch
    %112 = sbr.rel (0) target = $region21
  $region20: #{linear_lm_head.1} parent=0 // pred_region
    _
  $region21: #{linear_lm_head.1} parent=0 // pred_fallthru
    _

</llo_original>
